<compile_context>
chip_gen: v7x
topology: tpu7x:2x2x1
jax: 0.10.0
libtpu: 0.0.40
codegen_flags: <defaults>
</compile_context>

<pallas_src>
import jax
import jax.numpy as jnp
from jax.experimental import pallas as pl
from jax.experimental.pallas import tpu as pltpu


def _round_up(n, m):
    return ((n + m - 1) // m) * m


def _leaky_relu(v, slope=0.2):
    return jnp.where(v > 0, v, slope * v)


def _sublane_multiple(dtype):
    # f32 -> 8, bf16 -> 16, int8/fp8 -> 32 (sub-32-bit packs along sublanes).
    return max(8, 32 // jnp.dtype(dtype).itemsize)


def discriminator_kernel(x_ref,
                         w1_ref, b1_ref,
                         w2_ref, b2_ref,
                         w3_ref, b3_ref,
                         w4_ref, b4_ref,   # w4 passed as (1, hidden) row, b4 as (1, 1)
                         o_ref):
    """Fused 4-layer MLP forward for one batch tile.

    Layers 1-3 run on the MXU (f32 accumulation), bias add + LeakyReLU on the
    VPU in f32.  Layer 4 (N=1) is a per-lane multiply (VPU) + cross-lane sum
    (XLU); the result is stored lane-dense as a (1, batch_tile) row.

    The x tile is cast to the weight dtype IN VMEM (after the HBM DMA), so x
    travels over HBM exactly once in its original dtype — no wrapper cast.
    All ops are row-independent, so boundary-block garbage rows are harmless.
    """
    x = x_ref[...].astype(w1_ref.dtype)

    h = jnp.dot(x, w1_ref[...], preferred_element_type=jnp.float32) + b1_ref[...]
    h = _leaky_relu(h)

    h = jnp.dot(h.astype(w2_ref.dtype), w2_ref[...],
                preferred_element_type=jnp.float32) + b2_ref[...]
    h = _leaky_relu(h)

    h = jnp.dot(h.astype(w3_ref.dtype), w3_ref[...],
                preferred_element_type=jnp.float32) + b3_ref[...]
    h = _leaky_relu(h)

    # Final layer: avoid pushing a 1-column RHS through the MXU.
    prod = h * w4_ref[...].astype(jnp.float32)          # (bt, hidden) on the VPU
    logits = jnp.sum(prod, axis=-1)                     # (bt,) cross-lane reduce (XLU)
    o_ref[...] = (logits[None, :] + b4_ref[...]).astype(o_ref.dtype)  # (1, bt) lane-dense


def discriminator_forward(x, params, *, batch_tile=2048, matmul_dtype=None):
    """Forward pass.

    x:       (B, im_dim), float32 or bfloat16.  Passing bf16 x halves x's HBM
             traffic (the kernel is bandwidth-bound on x).
    params:  dict with w1..w4 as (in, out) and b1..b4 as (1, out), float32.
    batch_tile: rows per grid step.  Rounded to the dtype's sublane multiple,
             capped at the batch, auto-shrunk if the VMEM footprint is large,
             and capped so big batches produce >= 2 grid steps (v7x has 2 TCs).
    matmul_dtype: e.g. jnp.bfloat16 on ANY generation (v5e/v6e/v7x MXUs are all
             bf16-native).  Weights are pre-cast (tiny); x is cast inside the
             kernel.  Accumulation, bias add and LeakyReLU stay f32.
    Returns (B, 1) float32.
    """
    B, im_dim = x.shape
    f32 = jnp.float32

    w1, b1 = params["w1"], params["b1"]
    w2, b2 = params["w2"], params["b2"]
    w3, b3 = params["w3"], params["b3"]
    w4, b4 = params["w4"], params["b4"]
    h1, h2, h3 = w1.shape[1], w2.shape[1], w3.shape[1]

    # Present the final layer's weight as a (1, hidden) row for lane broadcast.
    w4_row = w4.reshape(1, h3).astype(f32)
    b4_row = b4.reshape(1, 1).astype(f32)

    if matmul_dtype is not None:
        # Weights are tiny: pre-cast them in the wrapper.  x is deliberately NOT
        # cast here (wrapper cast = extra HBM read+write of the whole batch).
        w1, w2, w3 = (w.astype(matmul_dtype) for w in (w1, w2, w3))

    # ---- tile sizing -------------------------------------------------------
    mult = _sublane_multiple(x.dtype)
    if matmul_dtype is not None:
        mult = max(mult, _sublane_multiple(matmul_dtype))

    bt = max(mult, (int(batch_tile) // mult) * mult)
    # v7x has 2 TensorCores: ensure >= 2 ("parallel") grid steps when each half
    # of the batch is still a reasonably sized tile (no effect on tiny batches).
    if B >= 2 * max(128, mult):
        bt = min(bt, _round_up(pl.cdiv(B, 2), mult))
    bt = min(bt, _round_up(B, mult))

    weight_bytes = sum(a.size * a.dtype.itemsize
                       for a in (w1, b1, w2, b2, w3, b3, w4_row, b4_row))

    def vmem_estimate(tile):
        x_tile = 2 * tile * im_dim * x.dtype.itemsize          # double-buffered x
        out_tile = 2 * tile * 4                                 # double-buffered (1, bt) f32
        residents = 2 * weight_bytes                            # double-buffered weights
        acts = 4 * tile * (h1 + h2 + h3)                        # f32 temporaries
        return x_tile + out_tile + residents + acts

    # Auto-shrink the tile if the footprint would crowd VMEM (rare).
    while bt > mult and vmem_estimate(bt) > 40 * 1024 * 1024:
        bt = max(mult, ((bt // 2) // mult) * mult)

    num_tiles = pl.cdiv(B, bt)   # boundary block may be partial; rows are independent
    vmem_limit = int(min(max(2 * vmem_estimate(bt), 16 * 1024 * 1024),
                         48 * 1024 * 1024))

    # Weights/biases are tiny: keep them fully VMEM-resident every grid step
    # via constant index maps.
    def resident(a):
        return pl.BlockSpec(a.shape, lambda i: (0, 0))

    flops = 2 * num_tiles * bt * (im_dim * h1 + h1 * h2 + h2 * h3 + h3)
    bytes_accessed = (B * im_dim * x.dtype.itemsize
                      + weight_bytes
                      + num_tiles * bt * 4)

    out = pl.pallas_call(
        discriminator_kernel,
        out_shape=jax.ShapeDtypeStruct((num_tiles, bt), f32),
        grid_spec=pltpu.PrefetchScalarGridSpec(
            num_scalar_prefetch=0,
            grid=(num_tiles,),
            in_specs=[
                pl.BlockSpec((bt, im_dim), lambda i: (i, 0)),   # x batch tile
                resident(w1), resident(b1),
                resident(w2), resident(b2),
                resident(w3), resident(b3),
                resident(w4_row), resident(b4_row),
            ],
            # Lane-dense output: one (1, batch_tile) row per grid step.
            out_specs=pl.BlockSpec((1, bt), lambda i: (i, 0)),
        ),
        compiler_params=pltpu.CompilerParams(
            dimension_semantics=("parallel",),          # megacore / 2-TC sharding
            vmem_limit_bytes=vmem_limit,
        ),
        cost_estimate=pl.CostEstimate(
            flops=flops, transcendentals=0, bytes_accessed=bytes_accessed),
    )(x, w1, b1, w2, b2, w3, b3, w4_row, b4_row)

    # (num_tiles, bt) row-major == batch order; drop boundary garbage rows.
    return out.reshape(num_tiles * bt, 1)[:B]


def init_discriminator_params(key, im_dim, hidden_dim):
    """Deterministic init matching nn.Linear's U(-1/sqrt(fan_in), 1/sqrt(fan_in)).
    Weights stored as (in, out) = PyTorch W.T ; biases as (1, out)."""
    dims = [im_dim, hidden_dim * 4, hidden_dim * 2, hidden_dim, 1]
    params = {}
    keys = jax.random.split(key, 2 * (len(dims) - 1))
    for layer in range(len(dims) - 1):
        fan_in, fan_out = dims[layer], dims[layer + 1]
        bound = 1.0 / (fan_in ** 0.5)
        wk, bk = keys[2 * layer], keys[2 * layer + 1]
        params[f"w{layer + 1}"] = jax.random.uniform(
            wk, (fan_in, fan_out), jnp.float32, minval=-bound, maxval=bound)
        params[f"b{layer + 1}"] = jax.random.uniform(
            bk, (1, fan_out), jnp.float32, minval=-bound, maxval=bound)
    return params


def _reference_forward(x, params):
    # NOTE: if used as a strict regression gate, wrap in
    # jax.default_matmul_precision("highest"); default precision matched the
    # kernel to 1e-4 in previous runs and is kept here.
    h = x
    for layer in range(1, 4):
        h = h @ params[f"w{layer}"] + params[f"b{layer}"]
        h = jnp.where(h > 0, h, 0.2 * h)
    return h @ params["w4"] + params["b4"]


if __name__ == "__main__":
    # Small shapes consistent with the module: im_dim=256, hidden_dim=32.
    B, IM_DIM, HIDDEN = 48, 256, 32

    key = jax.random.PRNGKey(0)
    k_x, k_p = jax.random.split(key)
    x = jax.random.normal(k_x, (B, IM_DIM), jnp.float32)
    params = init_discriminator_params(k_p, IM_DIM, HIDDEN)
    ref = _reference_forward(x, params)

    # 1) f32, default (large) tile: tile adapts down to the batch, grid=1.
    out_default = jax.block_until_ready(discriminator_forward(x, params))
    assert out_default.shape == (B, 1)
    assert jnp.allclose(out_default, ref, atol=1e-4, rtol=1e-4), "mismatch (f32 default)"

    # 2) f32 multi-tile with a partial boundary block: bt=32, grid=2, no padding.
    out_tiled = jax.block_until_ready(discriminator_forward(x, params, batch_tile=32))
    assert out_tiled.shape == (B, 1)
    assert jnp.allclose(out_tiled, ref, atol=1e-4, rtol=1e-4), "mismatch (f32 tiled)"

    # 3) bf16 MXU path (f32 x cast inside the kernel), partial boundary block.
    out_bf16 = jax.block_until_ready(
        discriminator_forward(x, params, batch_tile=32, matmul_dtype=jnp.bfloat16))
    assert out_bf16.shape == (B, 1)
    assert jnp.allclose(out_bf16, ref, atol=5e-2, rtol=5e-2), "mismatch (bf16 matmul)"

    # 4) End-to-end bf16 x (halves x HBM traffic) + bf16 MXU path.
    out_xbf16 = jax.block_until_ready(
        discriminator_forward(x.astype(jnp.bfloat16), params, matmul_dtype=jnp.bfloat16))
    assert out_xbf16.shape == (B, 1)
    assert jnp.allclose(out_xbf16, ref, atol=1e-1, rtol=1e-1), "mismatch (bf16 x)"

    print("KERNEL_OK")
</pallas_src>

<mosaic_0001>
module attributes {stable_mosaic.version = 11 : i64} {
  func.func @discriminator_kernel(%arg0: i32, %arg1: memref<48x256xf32, #tpu.memory_space<vmem>>, %arg2: memref<256x128xf32, #tpu.memory_space<vmem>>, %arg3: memref<1x128xf32, #tpu.memory_space<vmem>>, %arg4: memref<128x64xf32, #tpu.memory_space<vmem>>, %arg5: memref<1x64xf32, #tpu.memory_space<vmem>>, %arg6: memref<64x32xf32, #tpu.memory_space<vmem>>, %arg7: memref<1x32xf32, #tpu.memory_space<vmem>>, %arg8: memref<1x32xf32, #tpu.memory_space<vmem>>, %arg9: memref<1x1xf32, #tpu.memory_space<vmem>>, %arg10: memref<1x48xf32, #tpu.memory_space<vmem>>) attributes {dimension_semantics = [#tpu.dimension_semantics<parallel>], iteration_bounds = array<i64: 1>, scalar_prefetch = 0 : i64, scratch_operands = 0 : i64, tpu.core_type = #tpu.core_type<tc>, window_params = [{transform_indices = @transform_0, window_bounds = array<i64: 48, 256>}, {pipeline_mode = #tpu.pipeline_mode<synchronous>, transform_indices = @transform_1, window_bounds = array<i64: 256, 128>}, {pipeline_mode = #tpu.pipeline_mode<synchronous>, transform_indices = @transform_2, window_bounds = array<i64: 1, 128>}, {pipeline_mode = #tpu.pipeline_mode<synchronous>, transform_indices = @transform_3, window_bounds = array<i64: 128, 64>}, {pipeline_mode = #tpu.pipeline_mode<synchronous>, transform_indices = @transform_4, window_bounds = array<i64: 1, 64>}, {pipeline_mode = #tpu.pipeline_mode<synchronous>, transform_indices = @transform_5, window_bounds = array<i64: 64, 32>}, {pipeline_mode = #tpu.pipeline_mode<synchronous>, transform_indices = @transform_6, window_bounds = array<i64: 1, 32>}, {pipeline_mode = #tpu.pipeline_mode<synchronous>, transform_indices = @transform_7, window_bounds = array<i64: 1, 32>}, {pipeline_mode = #tpu.pipeline_mode<synchronous>, transform_indices = @transform_8, window_bounds = array<i64: 1, 1>}, {transform_indices = @transform_9, window_bounds = array<i64: 1, 48>}]} {
    %c0 = arith.constant 0 : index
    %c0_0 = arith.constant 0 : index
    %0 = vector.load %arg1[%c0, %c0_0] : memref<48x256xf32, #tpu.memory_space<vmem>>, vector<48x256xf32>
    %c0_1 = arith.constant 0 : index
    %c0_2 = arith.constant 0 : index
    %1 = vector.load %arg2[%c0_1, %c0_2] : memref<256x128xf32, #tpu.memory_space<vmem>>, vector<256x128xf32>
    %cst = arith.constant dense<0.000000e+00> : vector<48x128xf32>
    %2 = tpu.matmul %0, %1, %cst {dimension_numbers = #tpu.dot_dimension_numbers<[1], [0], [0], [1], [0, 0, 1, 1], [], []>} : vector<48x256xf32>, vector<256x128xf32>, vector<48x128xf32> -> vector<48x128xf32>
    %c0_3 = arith.constant 0 : index
    %c0_4 = arith.constant 0 : index
    %3 = vector.load %arg3[%c0_3, %c0_4] : memref<1x128xf32, #tpu.memory_space<vmem>>, vector<1x128xf32>
    %4 = vector.broadcast %3 : vector<1x128xf32> to vector<48x128xf32>
    %5 = arith.addf %2, %4 : vector<48x128xf32>
    %cst_5 = arith.constant 0.000000e+00 : f32
    %6 = vector.broadcast %cst_5 : f32 to vector<48x128xf32>
    %7 = arith.cmpf ogt, %5, %6 : vector<48x128xf32>
    %cst_6 = arith.constant 2.000000e-01 : f32
    %8 = vector.broadcast %cst_6 : f32 to vector<48x128xf32>
    %9 = arith.mulf %8, %5 : vector<48x128xf32>
    %10 = arith.select %7, %5, %9 : vector<48x128xi1>, vector<48x128xf32>
    %c0_7 = arith.constant 0 : index
    %c0_8 = arith.constant 0 : index
    %11 = vector.load %arg4[%c0_7, %c0_8] : memref<128x64xf32, #tpu.memory_space<vmem>>, vector<128x64xf32>
    %cst_9 = arith.constant dense<0.000000e+00> : vector<48x64xf32>
    %12 = tpu.matmul %10, %11, %cst_9 {dimension_numbers = #tpu.dot_dimension_numbers<[1], [0], [0], [1], [0, 0, 1, 1], [], []>} : vector<48x128xf32>, vector<128x64xf32>, vector<48x64xf32> -> vector<48x64xf32>
    %c0_10 = arith.constant 0 : index
    %c0_11 = arith.constant 0 : index
    %13 = vector.load %arg5[%c0_10, %c0_11] : memref<1x64xf32, #tpu.memory_space<vmem>>, vector<1x64xf32>
    %14 = vector.broadcast %13 : vector<1x64xf32> to vector<48x64xf32>
    %15 = arith.addf %12, %14 : vector<48x64xf32>
    %cst_12 = arith.constant 0.000000e+00 : f32
    %16 = vector.broadcast %cst_12 : f32 to vector<48x64xf32>
    %17 = arith.cmpf ogt, %15, %16 : vector<48x64xf32>
    %cst_13 = arith.constant 2.000000e-01 : f32
    %18 = vector.broadcast %cst_13 : f32 to vector<48x64xf32>
    %19 = arith.mulf %18, %15 : vector<48x64xf32>
    %20 = arith.select %17, %15, %19 : vector<48x64xi1>, vector<48x64xf32>
    %c0_14 = arith.constant 0 : index
    %c0_15 = arith.constant 0 : index
    %21 = vector.load %arg6[%c0_14, %c0_15] : memref<64x32xf32, #tpu.memory_space<vmem>>, vector<64x32xf32>
    %cst_16 = arith.constant dense<0.000000e+00> : vector<48x32xf32>
    %22 = tpu.matmul %20, %21, %cst_16 {dimension_numbers = #tpu.dot_dimension_numbers<[1], [0], [0], [1], [0, 0, 1, 1], [], []>} : vector<48x64xf32>, vector<64x32xf32>, vector<48x32xf32> -> vector<48x32xf32>
    %c0_17 = arith.constant 0 : index
    %c0_18 = arith.constant 0 : index
    %23 = vector.load %arg7[%c0_17, %c0_18] : memref<1x32xf32, #tpu.memory_space<vmem>>, vector<1x32xf32>
    %24 = vector.broadcast %23 : vector<1x32xf32> to vector<48x32xf32>
    %25 = arith.addf %22, %24 : vector<48x32xf32>
    %cst_19 = arith.constant 0.000000e+00 : f32
    %26 = vector.broadcast %cst_19 : f32 to vector<48x32xf32>
    %27 = arith.cmpf ogt, %25, %26 : vector<48x32xf32>
    %cst_20 = arith.constant 2.000000e-01 : f32
    %28 = vector.broadcast %cst_20 : f32 to vector<48x32xf32>
    %29 = arith.mulf %28, %25 : vector<48x32xf32>
    %30 = arith.select %27, %25, %29 : vector<48x32xi1>, vector<48x32xf32>
    %c0_21 = arith.constant 0 : index
    %c0_22 = arith.constant 0 : index
    %31 = vector.load %arg8[%c0_21, %c0_22] : memref<1x32xf32, #tpu.memory_space<vmem>>, vector<1x32xf32>
    %32 = vector.broadcast %31 : vector<1x32xf32> to vector<48x32xf32>
    %33 = arith.mulf %30, %32 : vector<48x32xf32>
    %cst_23 = arith.constant dense<0.000000e+00> : vector<48xf32>
    %34 = vector.multi_reduction <add>, %33, %cst_23 [1] : vector<48x32xf32> to vector<48xf32>
    %35 = vector.shape_cast %34 : vector<48xf32> to vector<1x48xf32>
    %c0_24 = arith.constant 0 : index
    %c0_25 = arith.constant 0 : index
    %36 = vector.load %arg9[%c0_24, %c0_25] : memref<1x1xf32, #tpu.memory_space<vmem>>, vector<1x1xf32>
    %37 = vector.broadcast %36 : vector<1x1xf32> to vector<1x48xf32>
    %38 = arith.addf %35, %37 : vector<1x48xf32>
    %c0_26 = arith.constant 0 : index
    %c0_27 = arith.constant 0 : index
    %39 = vector.load %arg10[%c0_26, %c0_27] : memref<1x48xf32, #tpu.memory_space<vmem>>, vector<1x48xf32>
    tpu.vector_store %arg10[%c0_26, %c0_27], %38 {strides = array<i32>} : memref<1x48xf32, #tpu.memory_space<vmem>>, vector<1x48xf32>,
    return
  }
  func.func @transform_0(%arg0: i32) -> (i32, i32) {
    %c0_i32 = arith.constant 0 : i32
    %c0_i32_0 = arith.constant 0 : i32
    return %arg0, %c0_i32 : i32, i32
  }
  func.func @transform_1(%arg0: i32) -> (i32, i32) {
    %c0_i32 = arith.constant 0 : i32
    %c0_i32_0 = arith.constant 0 : i32
    %c0_i32_1 = arith.constant 0 : i32
    return %c0_i32, %c0_i32_0 : i32, i32
  }
  func.func @transform_2(%arg0: i32) -> (i32, i32) {
    %c0_i32 = arith.constant 0 : i32
    %c0_i32_0 = arith.constant 0 : i32
    %c0_i32_1 = arith.constant 0 : i32
    return %c0_i32, %c0_i32_0 : i32, i32
  }
  func.func @transform_3(%arg0: i32) -> (i32, i32) {
    %c0_i32 = arith.constant 0 : i32
    %c0_i32_0 = arith.constant 0 : i32
    %c0_i32_1 = arith.constant 0 : i32
    return %c0_i32, %c0_i32_0 : i32, i32
  }
  func.func @transform_4(%arg0: i32) -> (i32, i32) {
    %c0_i32 = arith.constant 0 : i32
    %c0_i32_0 = arith.constant 0 : i32
    %c0_i32_1 = arith.constant 0 : i32
    return %c0_i32, %c0_i32_0 : i32, i32
  }
  func.func @transform_5(%arg0: i32) -> (i32, i32) {
    %c0_i32 = arith.constant 0 : i32
    %c0_i32_0 = arith.constant 0 : i32
    %c0_i32_1 = arith.constant 0 : i32
    return %c0_i32, %c0_i32_0 : i32, i32
  }
  func.func @transform_6(%arg0: i32) -> (i32, i32) {
    %c0_i32 = arith.constant 0 : i32
    %c0_i32_0 = arith.constant 0 : i32
    %c0_i32_1 = arith.constant 0 : i32
    return %c0_i32, %c0_i32_0 : i32, i32
  }
  func.func @transform_7(%arg0: i32) -> (i32, i32) {
    %c0_i32 = arith.constant 0 : i32
    %c0_i32_0 = arith.constant 0 : i32
    %c0_i32_1 = arith.constant 0 : i32
    return %c0_i32, %c0_i32_0 : i32, i32
  }
  func.func @transform_8(%arg0: i32) -> (i32, i32) {
    %c0_i32 = arith.constant 0 : i32
    %c0_i32_0 = arith.constant 0 : i32
    %c0_i32_1 = arith.constant 0 : i32
    return %c0_i32, %c0_i32_0 : i32, i32
  }
  func.func @transform_9(%arg0: i32) -> (i32, i32) {
    %c0_i32 = arith.constant 0 : i32
    %c0_i32_0 = arith.constant 0 : i32
    return %arg0, %c0_i32 : i32, i32
  }
}

</mosaic_0001>

<llo_original>
// kernel: tpu_custom_call.1
$region0: #{tpu_custom_call.1}
  #allocation0 [shape = 'u32[]', space=smem, size = 0x4, offset = 0x4, fixed_abs, tag = 'smem constant byte address 0x4 - core index']
  #allocation1 [shape = 'u32[144,128]{1,0:T(1,128)}', space=vmem, size = 0x12000, scoped, tag = 'internal scratch']
  #allocation2 [shape = 'f32[1,1]{1,0:T(1,128)S(1)}', space=vmem, size = 0x200, scoped, tag = 'scoped memory for tpu_custom_call.1']
  %s0 = inlined_call_operand.hbm [shape: f32[48,256], index: 0, kind: input, shape index: {}]
  %s1 = inlined_call_operand.vmem [shape: f32[256,128], index: 1, kind: input, shape index: {}]
  %s2 = inlined_call_operand.vmem [shape: f32[1,128], index: 2, kind: input, shape index: {}]
  %s3 = inlined_call_operand.vmem [shape: f32[128,64], index: 3, kind: input, shape index: {}]
  %s4 = inlined_call_operand.vmem [shape: f32[1,64], index: 4, kind: input, shape index: {}]
  %s5 = inlined_call_operand.vmem [shape: f32[64,32], index: 5, kind: input, shape index: {}]
  %s6 = inlined_call_operand.vmem [shape: f32[1,32], index: 6, kind: input, shape index: {}]
  %s7 = inlined_call_operand.vmem [shape: f32[1,32], index: 7, kind: input, shape index: {}]
  %s8 = inlined_call_operand.<no memory space> [shape: f32[1,1], index: 8, kind: input, shape index: {}]
  %s9 = inlined_call_operand.hbm [shape: f32[1,48], index: 9, kind: output, shape index: {}]
  %s10 = sld [smem:[#allocation0]]
  $region50: #{tpu_custom_call.1} parent=0
    _
  %s12 = ssub.s32 1, %s10
  %s13 = scalar_select 0, %s12, %s10
  %v14 = vstv %s8
  %15 = vst [vmem:[#allocation2] sm:$0x1] %v14
  $region1: #{tpu_custom_call.1} parent=0
    #allocation3 [shape = 'u8[49152]{0}', space=vmem, size = 0xc000, scoped, tag = 'input window, operand 0, single buffered']
    #allocation4 [shape = 's32[1]{0}', space=sflag, size = 0x4, scoped, tag = 'scoped memory for tpu_custom_call.1']
    #allocation5 [shape = 's32[1]{0}', space=sflag, size = 0x4, scoped, tag = 'scoped memory for tpu_custom_call.1']
    #allocation6 [shape = 'u8[512]{0}', space=vmem, size = 0x400, scoped, tag = 'output window, operand 0, single buffered']
    %16 = vsyncpa [#allocation4], 0
    %17 = vsyncpa [#allocation5], 0
    // Predicated region
    $region2: #{tpu_custom_call.1} parent=1 // pred_check
      _
    $region3: #{tpu_custom_call.1} parent=1 // pred_check_branch
      %19 = sbr.rel (0) target = $region5
    $region4: #{tpu_custom_call.1} parent=1 // pred_region
      %s21 = ssub.s32 1536, 1536
      %22 = vsyncadd [#allocation4], %s21
      %s23 = sshll.u32 [#allocation3], 4
      %s24 = int_to_ptr.vmem [resolvable:$true] %s23
      %29 = dma.hbm_to_vmem [thread:$0]  %s0, 1536, %s24, [#allocation4], 256, 256, 16
    $region5: #{tpu_custom_call.1} parent=1 // pred_fallthru
      _
    // Predicated region
    $region6: #{tpu_custom_call.1} parent=1 // pred_check
      _
    $region7: #{tpu_custom_call.1} parent=1 // pred_check_branch
      %31 = sbr.rel (0) target = $region9
    $region8: #{tpu_custom_call.1} parent=1 // pred_region
      _
    $region9: #{tpu_custom_call.1} parent=1 // pred_fallthru
      _
    // Predicated region
    $region10: #{tpu_custom_call.1} parent=1 // pred_check
      _
    $region11: #{tpu_custom_call.1} parent=1 // pred_check_branch
      %33 = sbr.rel (0) target = $region13
    $region12: #{tpu_custom_call.1} parent=1 // pred_region
      _
    $region13: #{tpu_custom_call.1} parent=1 // pred_fallthru
      _
    // Predicated region
    $region14: #{tpu_custom_call.1} parent=1 // pred_check
      _
    $region15: #{tpu_custom_call.1} parent=1 // pred_check_branch
      %35 = sbr.rel (0) target = $region17
    $region16: #{tpu_custom_call.1} parent=1 // pred_region
      _
    $region17: #{tpu_custom_call.1} parent=1 // pred_fallthru
      _
    // Predicated region
    $region18: #{tpu_custom_call.1} parent=1 // pred_check
      _
    $region19: #{tpu_custom_call.1} parent=1 // pred_check_branch
      %37 = sbr.rel (0) target = $region21
    $region20: #{tpu_custom_call.1} parent=1 // pred_region
      _
    $region21: #{tpu_custom_call.1} parent=1 // pred_fallthru
      _
    // Predicated region
    $region22: #{tpu_custom_call.1} parent=1 // pred_check
      _
    $region23: #{tpu_custom_call.1} parent=1 // pred_check_branch
      %39 = sbr.rel (0) target = $region25
    $region24: #{tpu_custom_call.1} parent=1 // pred_region
      _
    $region25: #{tpu_custom_call.1} parent=1 // pred_fallthru
      _
    // Predicated region
    $region26: #{tpu_custom_call.1} parent=1 // pred_check
      _
    $region27: #{tpu_custom_call.1} parent=1 // pred_check_branch
      %41 = sbr.rel (0) target = $region29
    $region28: #{tpu_custom_call.1} parent=1 // pred_region
      _
    $region29: #{tpu_custom_call.1} parent=1 // pred_fallthru
      _
    // Predicated region
    $region30: #{tpu_custom_call.1} parent=1 // pred_check
      _
    $region31: #{tpu_custom_call.1} parent=1 // pred_check_branch
      %43 = sbr.rel (0) target = $region33
    $region32: #{tpu_custom_call.1} parent=1 // pred_region
      _
    $region33: #{tpu_custom_call.1} parent=1 // pred_fallthru
      _
    // Predicated region
    $region34: #{tpu_custom_call.1} parent=1 // pred_check
      _
    $region35: #{tpu_custom_call.1} parent=1 // pred_check_branch
      %45 = sbr.rel (0) target = $region37
    $region36: #{tpu_custom_call.1} parent=1 // pred_region
      _
    $region37: #{tpu_custom_call.1} parent=1 // pred_fallthru
      _
    // Predicated region
    $region38: #{tpu_custom_call.1} parent=1 // pred_check
      _
    $region39: #{tpu_custom_call.1} parent=1 // pred_check_branch
      %47 = sbr.rel (0) target = $region41
    $region40: #{tpu_custom_call.1} parent=1 // pred_region
      %48 = dma.done [#allocation4], 1536
    $region41: #{tpu_custom_call.1} parent=1 // pred_fallthru
      _
    %v49 = vld [vmem:[#allocation3] sm:$0xff]
    %v50 = vld [vmem:[#allocation3 + $0x8] sm:$0xff]
    %v51 = vld [vmem:[#allocation3 + $0x10] sm:$0xff]
    %v52 = vld [vmem:[#allocation3 + $0x18] sm:$0xff]
    %v53 = vld [vmem:[#allocation3 + $0x20] sm:$0xff]
    %v54 = vld [vmem:[#allocation3 + $0x28] sm:$0xff]
    %v55 = vld [vmem:[#allocation3 + $0x30] sm:$0xff]
    %v56 = vld [vmem:[#allocation3 + $0x38] sm:$0xff]
    %v57 = vld [vmem:[#allocation3 + $0x40] sm:$0xff]
    %v58 = vld [vmem:[#allocation3 + $0x48] sm:$0xff]
    %v59 = vld [vmem:[#allocation3 + $0x50] sm:$0xff]
    %v60 = vld [vmem:[#allocation3 + $0x58] sm:$0xff]
    %v61 = vld [vmem:[%s1] sm:$0xff]
    %v62 = vld [vmem:[%s1 + $0x8] sm:$0xff]
    %v63 = vld [vmem:[%s1 + $0x10] sm:$0xff]
    %v64 = vld [vmem:[%s1 + $0x18] sm:$0xff]
    %v65 = vld [vmem:[%s1 + $0x20] sm:$0xff]
    %v66 = vld [vmem:[%s1 + $0x28] sm:$0xff]
    %v67 = vld [vmem:[%s1 + $0x30] sm:$0xff]
    %v68 = vld [vmem:[%s1 + $0x38] sm:$0xff]
    %v69 = vld [vmem:[%s1 + $0x40] sm:$0xff]
    %v70 = vld [vmem:[%s1 + $0x48] sm:$0xff]
    %v71 = vld [vmem:[%s1 + $0x50] sm:$0xff]
    %v72 = vld [vmem:[%s1 + $0x58] sm:$0xff]
    %v73 = vld [vmem:[%s1 + $0x60] sm:$0xff]
    %v74 = vld [vmem:[%s1 + $0x68] sm:$0xff]
    %v75 = vld [vmem:[%s1 + $0x70] sm:$0xff]
    %v76 = vld [vmem:[%s1 + $0x78] sm:$0xff]
    %v77 = vld [vmem:[%s1 + $0x80] sm:$0xff]
    %v78 = vld [vmem:[%s1 + $0x88] sm:$0xff]
    %v79 = vld [vmem:[%s1 + $0x90] sm:$0xff]
    %v80 = vld [vmem:[%s1 + $0x98] sm:$0xff]
    %v81 = vld [vmem:[%s1 + $0xa0] sm:$0xff]
    %v82 = vld [vmem:[%s1 + $0xa8] sm:$0xff]
    %v83 = vld [vmem:[%s1 + $0xb0] sm:$0xff]
    %v84 = vld [vmem:[%s1 + $0xb8] sm:$0xff]
    %v85 = vld [vmem:[%s1 + $0xc0] sm:$0xff]
    %v86 = vld [vmem:[%s1 + $0xc8] sm:$0xff]
    %v87 = vld [vmem:[%s1 + $0xd0] sm:$0xff]
    %v88 = vld [vmem:[%s1 + $0xd8] sm:$0xff]
    %v89 = vld [vmem:[%s1 + $0xe0] sm:$0xff]
    %v90 = vld [vmem:[%s1 + $0xe8] sm:$0xff]
    %v91 = vld [vmem:[%s1 + $0xf0] sm:$0xff]
    %v92 = vld [vmem:[%s1 + $0xf8] sm:$0xff]
    %v93 = vld [vmem:[%s2] sm:$0x1]
    %v95 = vlaneseq
    %v96 = vshrl.u32 %v95, 7
    %v97 = vsub.s32 0, %v96
    %v98 = vrot.slane %v93, %v97
    %100 = vmatprep.subr.mxu0 0.0
    %101 = vmatpush1.msra.mxu0 %v61
    %102 = vmatprep.subr.mxu0 0.0
    %103 = vmatpush1.msra.mxu0 %v62
    %104 = vmatprep.subr.mxu0 0.0
    %105 = vmatpush1.msra.mxu0 %v63
    %106 = vmatprep.subr.mxu0 0.0
    %107 = vmatpush1.msra.mxu0 %v64
    %108 = vmatprep.subr.mxu0 0.0
    %109 = vmatpush1.msra.mxu0 %v65
    %110 = vmatprep.subr.mxu0 0.0
    %111 = vmatpush1.msra.mxu0 %v66
    %112 = vmatprep.subr.mxu0 0.0
    %113 = vmatpush1.msra.mxu0 %v67
    %114 = vmatprep.subr.mxu0 0.0
    %115 = vmatpush1.msra.mxu0 %v68
    %116 = vmatprep.subr.mxu0 0.0
    %117 = vmatpush1.msra.mxu0 %v69
    %118 = vmatprep.subr.mxu0 0.0
    %119 = vmatpush1.msra.mxu0 %v70
    %120 = vmatprep.subr.mxu0 0.0
    %121 = vmatpush1.msra.mxu0 %v71
    %122 = vmatprep.subr.mxu0 0.0
    %123 = vmatpush1.msra.mxu0 %v72
    %124 = vmatprep.subr.mxu0 0.0
    %125 = vmatpush1.msra.mxu0 %v73
    %126 = vmatprep.subr.mxu0 0.0
    %127 = vmatpush1.msra.mxu0 %v74
    %128 = vmatprep.subr.mxu0 0.0
    %129 = vmatpush1.msra.mxu0 %v75
    %130 = vmatprep.subr.mxu0 0.0
    %131 = vmatpush1.msra.mxu0 %v76
    %132 = vmatprep.subr.mxu0 0.0
    %133 = vmatpush1.msra.mxu0 %v77
    %134 = vmatprep.subr.mxu0 0.0
    %135 = vmatpush1.msra.mxu0 %v78
    %136 = vmatprep.subr.mxu0 0.0
    %137 = vmatpush1.msra.mxu0 %v79
    %138 = vmatprep.subr.mxu0 0.0
    %139 = vmatpush1.msra.mxu0 %v80
    %140 = vmatprep.subr.mxu0 0.0
    %141 = vmatpush1.msra.mxu0 %v81
    %142 = vmatprep.subr.mxu0 0.0
    %143 = vmatpush1.msra.mxu0 %v82
    %144 = vmatprep.subr.mxu0 0.0
    %145 = vmatpush1.msra.mxu0 %v83
    %146 = vmatprep.subr.mxu0 0.0
    %147 = vmatpush1.msra.mxu0 %v84
    %148 = vmatprep.subr.mxu0 0.0
    %149 = vmatpush1.msra.mxu0 %v85
    %150 = vmatprep.subr.mxu0 0.0
    %151 = vmatpush1.msra.mxu0 %v86
    %152 = vmatprep.subr.mxu0 0.0
    %153 = vmatpush1.msra.mxu0 %v87
    %154 = vmatprep.subr.mxu0 0.0
    %155 = vmatpush1.msra.mxu0 %v88
    %156 = vmatprep.subr.mxu0 0.0
    %157 = vmatpush1.msra.mxu0 %v89
    %158 = vmatprep.subr.mxu0 0.0
    %159 = vmatpush1.msra.mxu0 %v90
    %160 = vmatprep.subr.mxu0 0.0
    %161 = vmatpush1.msra.mxu0 %v91
    %162 = vmatprep.subr.mxu0 0.0
    %163 = vmatpush1.msra.mxu0 %v92
    %164 = vmatprep.mubr.f32.mxu0 %v50
    %165 = vmatmul.mubr.f32.gmra.mrb[0].mxu0 %v49
    %v166 = vpop.f32.mrb[0].mxu0
    %v167 = vadd.f32 %v98, %v166
    %v168 = vpop.f32.mrb[0].mxu0
    %169 = vmatprep.mubr.f32.mxu0 %v52
    %170 = vmatmul.mubr.f32.gmra.mrb[0].mxu0 %v51
    %v171 = vpop.f32.mrb[0].mxu0
    %v172 = vadd.f32 %v98, %v171
    %v173 = vpop.f32.mrb[0].mxu0
    %174 = vmatprep.mubr.f32.mxu0 %v54
    %175 = vmatmul.mubr.f32.gmra.mrb[0].mxu0 %v53
    %v176 = vpop.f32.mrb[0].mxu0
    %v177 = vadd.f32 %v98, %v176
    %v178 = vpop.f32.mrb[0].mxu0
    %179 = vmatprep.mubr.f32.mxu0 %v56
    %180 = vmatmul.mubr.f32.gmra.mrb[0].mxu0 %v55
    %v181 = vpop.f32.mrb[0].mxu0
    %v182 = vadd.f32 %v98, %v181
    %v183 = vpop.f32.mrb[0].mxu0
    %184 = vmatprep.mubr.f32.mxu0 %v58
    %185 = vmatmul.mubr.f32.gmra.mrb[0].mxu0 %v57
    %v186 = vpop.f32.mrb[0].mxu0
    %v187 = vadd.f32 %v98, %v186
    %v188 = vpop.f32.mrb[0].mxu0
    %189 = vmatprep.mubr.f32.mxu0 %v60
    %190 = vmatmul.mubr.f32.gmra.mrb[0].mxu0 %v59
    %v191 = vpop.f32.mrb[0].mxu0
    %v192 = vadd.f32 %v98, %v191
    %v193 = vpop.f32.mrb[0].mxu0
    %194 = vdwg.mxu0
    %vm195 = vcmp.gt.f32.partialorder %v167, 0.0
    %vm196 = vcmp.gt.f32.partialorder %v172, 0.0
    %vm197 = vcmp.gt.f32.partialorder %v177, 0.0
    %vm198 = vcmp.gt.f32.partialorder %v182, 0.0
    %vm199 = vcmp.gt.f32.partialorder %v187, 0.0
    %vm200 = vcmp.gt.f32.partialorder %v192, 0.0
    %v201 = vmul.f32 %v167, 0.2
    %v202 = vmul.f32 %v172, 0.2
    %v203 = vmul.f32 %v177, 0.2
    %v204 = vmul.f32 %v182, 0.2
    %v205 = vmul.f32 %v187, 0.2
    %v206 = vmul.f32 %v192, 0.2
    %v207 = vsel %vm195, %v167, %v201
    %v208 = vsel %vm196, %v172, %v202
    %v209 = vsel %vm197, %v177, %v203
    %v210 = vsel %vm198, %v182, %v204
    %v211 = vsel %vm199, %v187, %v205
    %v212 = vsel %vm200, %v192, %v206
    %v213 = vld [vmem:[%s3] sm:$0xff]
    %v214 = vld [vmem:[%s3 + $0x8] sm:$0xff]
    %v215 = vld [vmem:[%s3 + $0x10] sm:$0xff]
    %v216 = vld [vmem:[%s3 + $0x18] sm:$0xff]
    %v217 = vld [vmem:[%s3 + $0x20] sm:$0xff]
    %v218 = vld [vmem:[%s3 + $0x28] sm:$0xff]
    %v219 = vld [vmem:[%s3 + $0x30] sm:$0xff]
    %v220 = vld [vmem:[%s3 + $0x38] sm:$0xff]
    %v221 = vld [vmem:[%s3 + $0x40] sm:$0xff]
    %v222 = vld [vmem:[%s3 + $0x48] sm:$0xff]
    %v223 = vld [vmem:[%s3 + $0x50] sm:$0xff]
    %v224 = vld [vmem:[%s3 + $0x58] sm:$0xff]
    %v225 = vld [vmem:[%s3 + $0x60] sm:$0xff]
    %v226 = vld [vmem:[%s3 + $0x68] sm:$0xff]
    %v227 = vld [vmem:[%s3 + $0x70] sm:$0xff]
    %v228 = vld [vmem:[%s3 + $0x78] sm:$0xff]
    %v229 = vld [vmem:[%s4] sm:$0x1]
    %v231 = vlaneseq
    %v232 = vshrl.u32 %v231, 7
    %v233 = vsub.s32 0, %v232
    %v234 = vrot.slane %v229, %v233
    %236 = vmatprep.subr.mxu0 0.0
    %237 = vmatpush1.msra.mxu0 %v213
    %238 = vmatprep.subr.mxu0 0.0
    %239 = vmatpush1.msra.mxu0 %v214
    %240 = vmatprep.subr.mxu0 0.0
    %241 = vmatpush1.msra.mxu0 %v215
    %242 = vmatprep.subr.mxu0 0.0
    %243 = vmatpush1.msra.mxu0 %v216
    %244 = vmatprep.subr.mxu0 0.0
    %245 = vmatpush1.msra.mxu0 %v217
    %246 = vmatprep.subr.mxu0 0.0
    %247 = vmatpush1.msra.mxu0 %v218
    %248 = vmatprep.subr.mxu0 0.0
    %249 = vmatpush1.msra.mxu0 %v219
    %250 = vmatprep.subr.mxu0 0.0
    %251 = vmatpush1.msra.mxu0 %v220
    %252 = vmatprep.subr.mxu0 0.0
    %253 = vmatpush1.msra.mxu0 %v221
    %254 = vmatprep.subr.mxu0 0.0
    %255 = vmatpush1.msra.mxu0 %v222
    %256 = vmatprep.subr.mxu0 0.0
    %257 = vmatpush1.msra.mxu0 %v223
    %258 = vmatprep.subr.mxu0 0.0
    %259 = vmatpush1.msra.mxu0 %v224
    %260 = vmatprep.subr.mxu0 0.0
    %261 = vmatpush1.msra.mxu0 %v225
    %262 = vmatprep.subr.mxu0 0.0
    %263 = vmatpush1.msra.mxu0 %v226
    %264 = vmatprep.subr.mxu0 0.0
    %265 = vmatpush1.msra.mxu0 %v227
    %266 = vmatprep.subr.mxu0 0.0
    %267 = vmatpush1.msra.mxu0 %v228
    %268 = vmatprep.subr.mxu0 0.0
    %269 = vmatpush1.msra.mxu0 0.0
    %270 = vmatprep.subr.mxu0 0.0
    %271 = vmatpush1.msra.mxu0 0.0
    %272 = vmatprep.subr.mxu0 0.0
    %273 = vmatpush1.msra.mxu0 0.0
    %274 = vmatprep.subr.mxu0 0.0
    %275 = vmatpush1.msra.mxu0 0.0
    %276 = vmatprep.subr.mxu0 0.0
    %277 = vmatpush1.msra.mxu0 0.0
    %278 = vmatprep.subr.mxu0 0.0
    %279 = vmatpush1.msra.mxu0 0.0
    %280 = vmatprep.subr.mxu0 0.0
    %281 = vmatpush1.msra.mxu0 0.0
    %282 = vmatprep.subr.mxu0 0.0
    %283 = vmatpush1.msra.mxu0 0.0
    %284 = vmatprep.subr.mxu0 0.0
    %285 = vmatpush1.msra.mxu0 0.0
    %286 = vmatprep.subr.mxu0 0.0
    %287 = vmatpush1.msra.mxu0 0.0
    %288 = vmatprep.subr.mxu0 0.0
    %289 = vmatpush1.msra.mxu0 0.0
    %290 = vmatprep.subr.mxu0 0.0
    %291 = vmatpush1.msra.mxu0 0.0
    %292 = vmatprep.subr.mxu0 0.0
    %293 = vmatpush1.msra.mxu0 0.0
    %294 = vmatprep.subr.mxu0 0.0
    %295 = vmatpush1.msra.mxu0 0.0
    %296 = vmatprep.subr.mxu0 0.0
    %297 = vmatpush1.msra.mxu0 0.0
    %298 = vmatprep.subr.mxu0 0.0
    %299 = vmatpush1.msra.mxu0 0.0
    %300 = vmatprep.mubr.f32.mxu0 0.0
    %301 = vmatmul.mubr.f32.gmra.mrb[0].mxu0 %v207
    %v302 = vpop.f32.mrb[0].mxu0
    %v303 = vadd.f32 %v234, %v302
    %v304 = vpop.f32.mrb[0].mxu0
    %305 = vmatprep.mubr.f32.mxu0 0.0
    %306 = vmatmul.mubr.f32.gmra.mrb[0].mxu0 %v208
    %v307 = vpop.f32.mrb[0].mxu0
    %v308 = vadd.f32 %v234, %v307
    %v309 = vpop.f32.mrb[0].mxu0
    %310 = vmatprep.mubr.f32.mxu0 0.0
    %311 = vmatmul.mubr.f32.gmra.mrb[0].mxu0 %v209
    %v312 = vpop.f32.mrb[0].mxu0
    %v313 = vadd.f32 %v234, %v312
    %v314 = vpop.f32.mrb[0].mxu0
    %315 = vmatprep.mubr.f32.mxu0 0.0
    %316 = vmatmul.mubr.f32.gmra.mrb[0].mxu0 %v210
    %v317 = vpop.f32.mrb[0].mxu0
    %v318 = vadd.f32 %v234, %v317
    %v319 = vpop.f32.mrb[0].mxu0
    %320 = vmatprep.mubr.f32.mxu0 0.0
    %321 = vmatmul.mubr.f32.gmra.mrb[0].mxu0 %v211
    %v322 = vpop.f32.mrb[0].mxu0
    %v323 = vadd.f32 %v234, %v322
    %v324 = vpop.f32.mrb[0].mxu0
    %325 = vmatprep.mubr.f32.mxu0 0.0
    %326 = vmatmul.mubr.f32.gmra.mrb[0].mxu0 %v212
    %v327 = vpop.f32.mrb[0].mxu0
    %v328 = vadd.f32 %v234, %v327
    %v329 = vpop.f32.mrb[0].mxu0
    %330 = vdwg.mxu0
    %vm331 = vcmp.gt.f32.partialorder %v303, 0.0
    %vm332 = vcmp.gt.f32.partialorder %v308, 0.0
    %vm333 = vcmp.gt.f32.partialorder %v313, 0.0
    %vm334 = vcmp.gt.f32.partialorder %v318, 0.0
    %vm335 = vcmp.gt.f32.partialorder %v323, 0.0
    %vm336 = vcmp.gt.f32.partialorder %v328, 0.0
    %v337 = vmul.f32 %v303, 0.2
    %v338 = vmul.f32 %v308, 0.2
    %v339 = vmul.f32 %v313, 0.2
    %v340 = vmul.f32 %v318, 0.2
    %v341 = vmul.f32 %v323, 0.2
    %v342 = vmul.f32 %v328, 0.2
    %v343 = vsel %vm331, %v303, %v337
    %v344 = vsel %vm332, %v308, %v338
    %v345 = vsel %vm333, %v313, %v339
    %v346 = vsel %vm334, %v318, %v340
    %v347 = vsel %vm335, %v323, %v341
    %v348 = vsel %vm336, %v328, %v342
    %v349 = vld [vmem:[%s5] sm:$0xff]
    %v350 = vld [vmem:[%s5 + $0x8] sm:$0xff]
    %v351 = vld [vmem:[%s5 + $0x10] sm:$0xff]
    %v352 = vld [vmem:[%s5 + $0x18] sm:$0xff]
    %v353 = vld [vmem:[%s5 + $0x20] sm:$0xff]
    %v354 = vld [vmem:[%s5 + $0x28] sm:$0xff]
    %v355 = vld [vmem:[%s5 + $0x30] sm:$0xff]
    %v356 = vld [vmem:[%s5 + $0x38] sm:$0xff]
    %v357 = vld [vmem:[%s6] sm:$0x1]
    %v359 = vlaneseq
    %v360 = vshrl.u32 %v359, 7
    %v361 = vsub.s32 0, %v360
    %v362 = vrot.slane %v357, %v361
    %vm364 = vcmask 523264
    %v366 = vsel %vm364, %v343, 0
    %v369 = vsel %vm364, %v344, 0
    %v372 = vsel %vm364, %v345, 0
    %v375 = vsel %vm364, %v346, 0
    %v378 = vsel %vm364, %v347, 0
    %v381 = vsel %vm364, %v348, 0
    %383 = vmatprep.subr.mxu0 0.0
    %384 = vmatpush1.msra.mxu0 %v349
    %385 = vmatprep.subr.mxu0 0.0
    %386 = vmatpush1.msra.mxu0 %v350
    %387 = vmatprep.subr.mxu0 0.0
    %388 = vmatpush1.msra.mxu0 %v351
    %389 = vmatprep.subr.mxu0 0.0
    %390 = vmatpush1.msra.mxu0 %v352
    %391 = vmatprep.subr.mxu0 0.0
    %392 = vmatpush1.msra.mxu0 %v353
    %393 = vmatprep.subr.mxu0 0.0
    %394 = vmatpush1.msra.mxu0 %v354
    %395 = vmatprep.subr.mxu0 0.0
    %396 = vmatpush1.msra.mxu0 %v355
    %397 = vmatprep.subr.mxu0 0.0
    %398 = vmatpush1.msra.mxu0 %v356
    %399 = vmatprep.subr.mxu0 0.0
    %400 = vmatpush1.msra.mxu0 0.0
    %401 = vmatprep.subr.mxu0 0.0
    %402 = vmatpush1.msra.mxu0 0.0
    %403 = vmatprep.subr.mxu0 0.0
    %404 = vmatpush1.msra.mxu0 0.0
    %405 = vmatprep.subr.mxu0 0.0
    %406 = vmatpush1.msra.mxu0 0.0
    %407 = vmatprep.subr.mxu0 0.0
    %408 = vmatpush1.msra.mxu0 0.0
    %409 = vmatprep.subr.mxu0 0.0
    %410 = vmatpush1.msra.mxu0 0.0
    %411 = vmatprep.subr.mxu0 0.0
    %412 = vmatpush1.msra.mxu0 0.0
    %413 = vmatprep.subr.mxu0 0.0
    %414 = vmatpush1.msra.mxu0 0.0
    %415 = vmatprep.subr.mxu0 0.0
    %416 = vmatpush1.msra.mxu0 0.0
    %417 = vmatprep.subr.mxu0 0.0
    %418 = vmatpush1.msra.mxu0 0.0
    %419 = vmatprep.subr.mxu0 0.0
    %420 = vmatpush1.msra.mxu0 0.0
    %421 = vmatprep.subr.mxu0 0.0
    %422 = vmatpush1.msra.mxu0 0.0
    %423 = vmatprep.subr.mxu0 0.0
    %424 = vmatpush1.msra.mxu0 0.0
    %425 = vmatprep.subr.mxu0 0.0
    %426 = vmatpush1.msra.mxu0 0.0
    %427 = vmatprep.subr.mxu0 0.0
    %428 = vmatpush1.msra.mxu0 0.0
    %429 = vmatprep.subr.mxu0 0.0
    %430 = vmatpush1.msra.mxu0 0.0
    %431 = vmatprep.subr.mxu0 0.0
    %432 = vmatpush1.msra.mxu0 0.0
    %433 = vmatprep.subr.mxu0 0.0
    %434 = vmatpush1.msra.mxu0 0.0
    %435 = vmatprep.subr.mxu0 0.0
    %436 = vmatpush1.msra.mxu0 0.0
    %437 = vmatprep.subr.mxu0 0.0
    %438 = vmatpush1.msra.mxu0 0.0
    %439 = vmatprep.subr.mxu0 0.0
    %440 = vmatpush1.msra.mxu0 0.0
    %441 = vmatprep.subr.mxu0 0.0
    %442 = vmatpush1.msra.mxu0 0.0
    %443 = vmatprep.subr.mxu0 0.0
    %444 = vmatpush1.msra.mxu0 0.0
    %445 = vmatprep.subr.mxu0 0.0
    %446 = vmatpush1.msra.mxu0 0.0
    %447 = vmatprep.mubr.f32.mxu0 0.0
    %448 = vmatmul.mubr.f32.gmra.mrb[0].mxu0 %v366
    %v449 = vpop.f32.mrb[0].mxu0
    %v450 = vadd.f32 %v362, %v449
    %v451 = vpop.f32.mrb[0].mxu0
    %452 = vmatprep.mubr.f32.mxu0 0.0
    %453 = vmatmul.mubr.f32.gmra.mrb[0].mxu0 %v369
    %v454 = vpop.f32.mrb[0].mxu0
    %v455 = vadd.f32 %v362, %v454
    %v456 = vpop.f32.mrb[0].mxu0
    %457 = vmatprep.mubr.f32.mxu0 0.0
    %458 = vmatmul.mubr.f32.gmra.mrb[0].mxu0 %v372
    %v459 = vpop.f32.mrb[0].mxu0
    %v460 = vadd.f32 %v362, %v459
    %v461 = vpop.f32.mrb[0].mxu0
    %462 = vmatprep.mubr.f32.mxu0 0.0
    %463 = vmatmul.mubr.f32.gmra.mrb[0].mxu0 %v375
    %v464 = vpop.f32.mrb[0].mxu0
    %v465 = vadd.f32 %v362, %v464
    %v466 = vpop.f32.mrb[0].mxu0
    %467 = vmatprep.mubr.f32.mxu0 0.0
    %468 = vmatmul.mubr.f32.gmra.mrb[0].mxu0 %v378
    %v469 = vpop.f32.mrb[0].mxu0
    %v470 = vadd.f32 %v362, %v469
    %v471 = vpop.f32.mrb[0].mxu0
    %472 = vmatprep.mubr.f32.mxu0 0.0
    %473 = vmatmul.mubr.f32.gmra.mrb[0].mxu0 %v381
    %v474 = vpop.f32.mrb[0].mxu0
    %v475 = vadd.f32 %v362, %v474
    %v476 = vpop.f32.mrb[0].mxu0
    %477 = vdwg.mxu0
    %vm478 = vcmp.gt.f32.partialorder %v450, 0.0
    %vm479 = vcmp.gt.f32.partialorder %v455, 0.0
    %vm480 = vcmp.gt.f32.partialorder %v460, 0.0
    %vm481 = vcmp.gt.f32.partialorder %v465, 0.0
    %vm482 = vcmp.gt.f32.partialorder %v470, 0.0
    %vm483 = vcmp.gt.f32.partialorder %v475, 0.0
    %v484 = vmul.f32 %v450, 0.2
    %v485 = vmul.f32 %v455, 0.2
    %v486 = vmul.f32 %v460, 0.2
    %v487 = vmul.f32 %v465, 0.2
    %v488 = vmul.f32 %v470, 0.2
    %v489 = vmul.f32 %v475, 0.2
    %v490 = vsel %vm478, %v450, %v484
    %v491 = vsel %vm479, %v455, %v485
    %v492 = vsel %vm480, %v460, %v486
    %v493 = vsel %vm481, %v465, %v487
    %v494 = vsel %vm482, %v470, %v488
    %v495 = vsel %vm483, %v475, %v489
    %v496 = vld [vmem:[%s7] sm:$0x1]
    %v498 = vlaneseq
    %v499 = vshrl.u32 %v498, 7
    %v500 = vsub.s32 0, %v499
    %v501 = vrot.slane %v496, %v500
    %v503 = vmul.f32 %v490, %v501
    %v504 = vmul.f32 %v491, %v501
    %v505 = vmul.f32 %v492, %v501
    %v506 = vmul.f32 %v493, %v501
    %v507 = vmul.f32 %v494, %v501
    %v508 = vmul.f32 %v495, %v501
    %vm509 = vcmask 261120
    %v510 = vsel %vm509, %v503, 0.0
    %511 = vadd.xlane.f32.xlu0 %v510
    %v512 = vpop.xlane.xlu0 %511
    %v513 = vsel %vm509, %v504, 0.0
    %514 = vadd.xlane.f32.xlu0 %v513
    %v515 = vpop.xlane.xlu0 %514
    %v516 = vsel %vm509, %v505, 0.0
    %517 = vadd.xlane.f32.xlu0 %v516
    %v518 = vpop.xlane.xlu0 %517
    %v519 = vsel %vm509, %v506, 0.0
    %520 = vadd.xlane.f32.xlu0 %v519
    %v521 = vpop.xlane.xlu0 %520
    %v522 = vsel %vm509, %v507, 0.0
    %523 = vadd.xlane.f32.xlu0 %v522
    %v524 = vpop.xlane.xlu0 %523
    %v525 = vsel %vm509, %v508, 0.0
    %526 = vadd.xlane.f32.xlu0 %v525
    %v527 = vpop.xlane.xlu0 %526
    %v528 = vld [vmem:[#allocation2] sm:$0x1]
    %530 = vset.pattern.permute.xlu0 0
    %531 = vperm.xlu0 %530, %v528
    %v532 = vpop.permute.xlu0 %531
    %v534 = vlaneseq
    %v535 = vshrl.u32 %v534, 7
    %v536 = vsub.s32 0, %v535
    %v537 = vrot.slane %v532, %v536
    %v538 = vadd.f32 %v512, %v537
    %v539 = vadd.f32 %v515, %v537
    %v540 = vadd.f32 %v518, %v537
    %v541 = vadd.f32 %v521, %v537
    %v542 = vadd.f32 %v524, %v537
    %v543 = vadd.f32 %v527, %v537
    %v550 = vlaneseq
    %v551 = vand.u32 %v550, 127
    %v552 = vlaneseq
    %v553 = vshrl.u32 %v552, 7
    %v554 = vsub.s32 %v551, %v553
    %v555 = vrot.slane %v538, %v554
    %v556 = vadd.s32 %v551, 4294967288
    %v557 = vlaneseq
    %v558 = vshrl.u32 %v557, 7
    %v559 = vsub.s32 %v556, %v558
    %v560 = vrot.slane %v539, %v559
    %vm561 = vcmask 130112
    %v562 = vsel %vm561, %v560, %v555
    %v563 = vadd.s32 %v551, 4294967280
    %v564 = vlaneseq
    %v565 = vshrl.u32 %v564, 7
    %v566 = vsub.s32 %v563, %v565
    %v567 = vrot.slane %v540, %v566
    %vm568 = vcmask 195712
    %v569 = vsel %vm568, %v567, %v562
    %v570 = vadd.s32 %v551, 4294967272
    %v571 = vlaneseq
    %v572 = vshrl.u32 %v571, 7
    %v573 = vsub.s32 %v570, %v572
    %v574 = vrot.slane %v541, %v573
    %vm575 = vcmask 261312
    %v576 = vsel %vm575, %v574, %v569
    %v577 = vadd.s32 %v551, 4294967264
    %v578 = vlaneseq
    %v579 = vshrl.u32 %v578, 7
    %v580 = vsub.s32 %v577, %v579
    %v581 = vrot.slane %v542, %v580
    %vm582 = vcmask 326912
    %v583 = vsel %vm582, %v581, %v576
    %v584 = vadd.s32 %v551, 4294967256
    %v585 = vlaneseq
    %v586 = vshrl.u32 %v585, 7
    %v587 = vsub.s32 %v584, %v586
    %v588 = vrot.slane %v543, %v587
    %vm589 = vcmask 392512
    %v590 = vsel %vm589, %v588, %v583
    %vm592 = vcmask 385024
    %593 = vst.msk [vmem:[#allocation6] sm:$0x1] %vm592, %v590
    // Predicated region
    $region42: #{tpu_custom_call.1} parent=1 // pred_check
      _
    $region43: #{tpu_custom_call.1} parent=1 // pred_check_branch
      %595 = sbr.rel (0) target = $region45
    $region44: #{tpu_custom_call.1} parent=1 // pred_region
      %s597 = ssub.s32 16, 16
      %598 = vsyncadd [#allocation5], %s597
      %s600 = sshll.u32 [#allocation6], 4
      %s601 = int_to_ptr.vmem [resolvable:$true] %s600
      %603 = dma.vmem_to_hbm [thread:$0]  %s601, 16, %s9, [#allocation5]
    $region45: #{tpu_custom_call.1} parent=1 // pred_fallthru
      _
    // Predicated region
    $region46: #{tpu_custom_call.1} parent=1 // pred_check
      _
    $region47: #{tpu_custom_call.1} parent=1 // pred_check_branch
      %605 = sbr.rel (0) target = $region49
    $region48: #{tpu_custom_call.1} parent=1 // pred_region
      %606 = dma.done [#allocation5], 16
    $region49: #{tpu_custom_call.1} parent=1 // pred_fallthru
      _
    %607 = vsyncpa [#allocation4], 1
    %608 = vsyncpa [#allocation5], 1

</llo_original>
